<compile_context>
chip_gen: v7x
topology: tpu7x:2x2x1
jax: 0.10.0
libtpu: 0.0.40
codegen_flags: <defaults>
</compile_context>

<pallas_src>
import jax
import jax.numpy as jnp
from jax import lax
from jax.experimental import pallas as pl
from jax.experimental.pallas import tpu as pltpu


def _sublane_multiple(itemsize):
    # (8, 128) tiling rule: 8 sublanes for f32, 16 for bf16, 32 for int8.
    return {4: 8, 2: 16, 1: 32}.get(itemsize, 8)


def _normalize_p(p):
    """Integral float p -> Python int so the pow stays on the VPU (integer_pow),
    never exp(p*log x) on the single EUP slot."""
    if p == float("inf"):
        return p
    fp = float(p)
    return int(fp) if fp.is_integer() else fp


def _plan(R, S, itemsize):
    """Pick (tile_r, num_tiles, lane_dense_output)."""
    sublane = _sublane_multiple(itemsize)
    s_pad = -(-S // 128) * 128                 # lane padding Mosaic really allocates
    per_row = s_pad * itemsize

    # ~4 MiB of lane-padded input per pipelined block (measured sweet spot for
    # HBM roofline), instead of a fixed row cap.
    tile_r = max(sublane, (4 * 1024 * 1024) // per_row)
    # Keep >= 4 grid steps when rows allow it: both v7x TensorCores get work
    # and each still double-buffers its DMAs.
    if R >= 4 * sublane:
        tile_r = min(tile_r, max(sublane, R // 4))
    tile_r = max(sublane, (tile_r // sublane) * sublane)

    if tile_r >= R:
        return R, 1, True                      # single block == whole array

    # Lane-dense (1, tile_r) output blocks need tile_r % 128 == 0; that is fine
    # unless a 128-row input block would already be huge (pathological S), in
    # which case fall back to the (tile_r, 1) column output.
    if 128 * per_row <= 8 * 1024 * 1024:
        tile_r = max(128, (tile_r // 128) * 128)
        if tile_r >= R:
            return R, 1, True
        return tile_r, -(-R // tile_r), True
    return tile_r, -(-R // tile_r), False


def _make_kernel(p, inv_hw, lane_dense):
    """Per-tile kernel; p (normalized), 1/(H*W) and output layout baked in."""

    def kernel(x_ref, o_ref):
        x = x_ref[...]                                         # (tile_r, S), native dtype
        if p == float("inf"):
            red = jnp.max(x, axis=-1)                          # exact in native dtype
        elif p == 1:
            # fold the f32 upcast into the reduction; mul by constant 1/HW
            red = jnp.sum(x, axis=-1, dtype=jnp.float32) * inv_hw
        else:
            if p == 2:
                xp = x * x
            elif p == 3:
                xp = x * x * x
            elif p == 4:
                x2 = x * x
                xp = x2 * x2
            elif isinstance(p, int):
                xp = lax.integer_pow(x, p)                     # VPU multiplies, not EUP
            else:
                # true non-integer p: matches torch.pow (NaN for negative inputs)
                xp = x.astype(jnp.float32) ** p
            s = jnp.sum(xp, axis=-1, dtype=jnp.float32) * inv_hw
            red = jnp.sign(s) * jnp.abs(s) ** (1.0 / p)        # per-row scalars only
        red = red.astype(o_ref.dtype)
        if lane_dense:
            o_ref[...] = red.reshape(1, -1)                    # full-width lane store
        else:
            o_ref[...] = red.reshape(-1, 1)                    # column fallback

    return kernel


def global_descriptor(x, p=1):
    """GlobalDescriptor.forward: [B, C, H, W] -> [B, C]."""
    assert x.ndim == 4, (
        "the input tensor of GlobalDescriptor must be the shape of [B, C, H, W]"
    )
    B, C, H, W = x.shape
    R, S = B * C, H * W
    xr = x.reshape(R, S)                       # contiguous -> free reshape

    itemsize = jnp.dtype(x.dtype).itemsize
    p_n = _normalize_p(p)
    tile_r, num_tiles, lane_dense = _plan(R, S, itemsize)

    # VMEM limit derived from the real (lane-padded) tile footprint:
    # 2 pipelined input buffers + a conservative full-tile f32 temp + slack,
    # clamped to [32, 48] MiB (48 MiB stays safe on v7x's 64 MiB physical VMEM).
    s_pad = -(-S // 128) * 128
    block_in = tile_r * s_pad * itemsize
    needed = 2 * block_in + tile_r * s_pad * 4 + (1 << 20)
    vmem_limit = int(min(48 << 20, max(32 << 20, needed * 5 // 4)))

    # Advisory cost hint: memory bound; no per-element transcendentals unless p
    # is a genuine non-integer float.
    if p_n == 1 or p_n == float("inf"):
        flops, transc = R * S, 0
    elif isinstance(p_n, int):
        flops, transc = R * S * (p_n + 1), R       # 1/p root only touches R scalars
    else:
        flops, transc = 2 * R * S, 2 * R * S + R   # exp/log per element
    cost = pl.CostEstimate(
        flops=flops,
        transcendentals=transc,
        bytes_accessed=R * S * itemsize + R * itemsize,
    )

    in_spec = pl.BlockSpec((tile_r, S), lambda i: (i, 0))
    if lane_dense:
        out_shape = jax.ShapeDtypeStruct((1, num_tiles * tile_r), x.dtype)
        out_spec = pl.BlockSpec((1, tile_r), lambda i: (0, i))
    else:
        out_shape = jax.ShapeDtypeStruct((R, 1), x.dtype)
        out_spec = pl.BlockSpec((tile_r, 1), lambda i: (i, 0))

    out = pl.pallas_call(
        _make_kernel(p_n, 1.0 / S, lane_dense),
        out_shape=out_shape,
        grid_spec=pl.GridSpec(
            grid=(num_tiles,),
            in_specs=[in_spec],
            out_specs=out_spec,
        ),
        compiler_params=pltpu.CompilerParams(
            dimension_semantics=("parallel",),     # independent row tiles (megacore)
            vmem_limit_bytes=vmem_limit,
        ),
        cost_estimate=cost,
    )(xr)

    if lane_dense:
        return out[0, :R].reshape(B, C)            # drop padded garbage rows
    return out.reshape(R)[:R].reshape(B, C)


if __name__ == "__main__":
    key = jax.random.PRNGKey(0)
    k1, k2 = jax.random.split(key)

    # Small shape consistent with the module: [B, C, H, W] = [2, 4, 16, 16]
    B, C, H, W = 2, 4, 16, 16
    x = jax.random.normal(k1, (B, C, H, W), dtype=jnp.float32)

    # p = 1 (module default): spatial mean
    out1 = jax.block_until_ready(global_descriptor(x, p=1))
    ref1 = x.mean(axis=(-1, -2))
    assert out1.shape == (B, C)
    assert jnp.allclose(out1, ref1, atol=1e-5, rtol=1e-5)

    # p = inf: spatial max (adaptive_max_pool2d to 1x1, flattened)
    out_inf = jax.block_until_ready(global_descriptor(x, p=float("inf")))
    ref_inf = x.max(axis=(-1, -2))
    assert jnp.allclose(out_inf, ref_inf, atol=1e-5, rtol=1e-5)

    # p = 3: generalized-mean branch (integer exponent -> VPU multiplies)
    out3 = jax.block_until_ready(global_descriptor(x, p=3))
    s = (x ** 3).mean(axis=(-1, -2))
    ref3 = jnp.sign(s) * jnp.abs(s) ** (1.0 / 3.0)
    assert jnp.allclose(out3, ref3, atol=1e-4, rtol=1e-4)

    # Multi-tile path: R = 200 rows, small 7x7 spatial, lane-dense output blocks
    y = jax.random.normal(k2, (2, 100, 7, 7), dtype=jnp.float32)
    outm = jax.block_until_ready(global_descriptor(y, p=1))
    refm = y.mean(axis=(-1, -2))
    assert outm.shape == (2, 100)
    assert jnp.allclose(outm, refm, atol=1e-5, rtol=1e-5)

    outm_inf = jax.block_until_ready(global_descriptor(y, p=float("inf")))
    assert jnp.allclose(outm_inf, y.max(axis=(-1, -2)), atol=1e-5, rtol=1e-5)

    print("KERNEL_OK")
</pallas_src>

<mosaic_0001>
module attributes {stable_mosaic.version = 11 : i64} {
  func.func @kernel(%arg0: i32, %arg1: memref<8x256xf32, #tpu.memory_space<vmem>>, %arg2: memref<1x8xf32, #tpu.memory_space<vmem>>) attributes {dimension_semantics = [#tpu.dimension_semantics<parallel>], iteration_bounds = array<i64: 1>, scalar_prefetch = 0 : i64, scratch_operands = 0 : i64, tpu.core_type = #tpu.core_type<tc>, window_params = [{transform_indices = @transform_0, window_bounds = array<i64: 8, 256>}, {transform_indices = @transform_1, window_bounds = array<i64: 1, 8>}]} {
    %c0 = arith.constant 0 : index
    %c0_0 = arith.constant 0 : index
    %0 = vector.load %arg1[%c0, %c0_0] : memref<8x256xf32, #tpu.memory_space<vmem>>, vector<8x256xf32>
    %cst = arith.constant dense<0.000000e+00> : vector<8xf32>
    %1 = vector.multi_reduction <add>, %0, %cst [1] : vector<8x256xf32> to vector<8xf32>
    %cst_1 = arith.constant 3.906250e-03 : f32
    %2 = vector.broadcast %cst_1 : f32 to vector<8xf32>
    %3 = arith.mulf %1, %2 : vector<8xf32>
    %4 = vector.shape_cast %3 : vector<8xf32> to vector<1x8xf32>
    %c0_2 = arith.constant 0 : index
    %c0_3 = arith.constant 0 : index
    %5 = vector.load %arg2[%c0_2, %c0_3] : memref<1x8xf32, #tpu.memory_space<vmem>>, vector<1x8xf32>
    tpu.vector_store %arg2[%c0_2, %c0_3], %4 {strides = array<i32>} : memref<1x8xf32, #tpu.memory_space<vmem>>, vector<1x8xf32>,
    return
  }
  func.func @transform_0(%arg0: i32) -> (i32, i32) {
    %c0_i32 = arith.constant 0 : i32
    %c0_i32_0 = arith.constant 0 : i32
    return %arg0, %c0_i32 : i32, i32
  }
  func.func @transform_1(%arg0: i32) -> (i32, i32) {
    %c0_i32 = arith.constant 0 : i32
    %c0_i32_0 = arith.constant 0 : i32
    return %c0_i32, %arg0 : i32, i32
  }
}

</mosaic_0001>

<llo_original>
// kernel: tpu_custom_call.1
$region0: #{tpu_custom_call.1}
  #allocation0 [shape = 'u32[]', space=smem, size = 0x4, offset = 0x4, fixed_abs, tag = 'smem constant byte address 0x4 - core index']
  #allocation1 [shape = 'u32[144,128]{1,0:T(1,128)}', space=vmem, size = 0x12000, scoped, tag = 'internal scratch']
  %s0 = inlined_call_operand.hbm [shape: f32[8,256], index: 0, kind: input, shape index: {}]
  %s1 = inlined_call_operand.hbm [shape: f32[1,8], index: 1, kind: output, shape index: {}]
  %s2 = sld [smem:[#allocation0]]
  $region18: #{tpu_custom_call.1} parent=0
    _
  %s4 = ssub.s32 1, %s2
  %s5 = scalar_select 0, %s4, %s2
  $region1: #{tpu_custom_call.1} parent=0
    #allocation2 [shape = 'u8[8192]{0}', space=vmem, size = 0x2000, scoped, tag = 'input window, operand 0, single buffered']
    #allocation3 [shape = 's32[1]{0}', space=sflag, size = 0x4, scoped, tag = 'scoped memory for tpu_custom_call.1']
    #allocation4 [shape = 's32[1]{0}', space=sflag, size = 0x4, scoped, tag = 'scoped memory for tpu_custom_call.1']
    #allocation5 [shape = 'u8[512]{0}', space=vmem, size = 0x400, scoped, tag = 'output window, operand 0, single buffered']
    %6 = vsyncpa [#allocation3], 0
    %7 = vsyncpa [#allocation4], 0
    // Predicated region
    $region2: #{tpu_custom_call.1} parent=1 // pred_check
      _
    $region3: #{tpu_custom_call.1} parent=1 // pred_check_branch
      %9 = sbr.rel (0) target = $region5
    $region4: #{tpu_custom_call.1} parent=1 // pred_region
      %s11 = ssub.s32 256, 256
      %12 = vsyncadd [#allocation3], %s11
      %s14 = sshll.u32 [#allocation2], 4
      %s15 = int_to_ptr.vmem [resolvable:$true] %s14
      %17 = dma.hbm_to_vmem [thread:$0]  %s0, 256, %s15, [#allocation3]
    $region5: #{tpu_custom_call.1} parent=1 // pred_fallthru
      _
    // Predicated region
    $region6: #{tpu_custom_call.1} parent=1 // pred_check
      _
    $region7: #{tpu_custom_call.1} parent=1 // pred_check_branch
      %19 = sbr.rel (0) target = $region9
    $region8: #{tpu_custom_call.1} parent=1 // pred_region
      %20 = dma.done [#allocation3], 256
    $region9: #{tpu_custom_call.1} parent=1 // pred_fallthru
      _
    %v21 = vld [vmem:[#allocation2] sm:$0xff]
    %v22 = vld [vmem:[#allocation2 + $0x8] sm:$0xff]
    %v23 = vadd.f32 %v21, %v22
    %24 = vadd.xlane.f32.xlu0 %v23
    %v25 = vpop.xlane.xlu0 %24
    %v26 = vmul.f32 %v25, 0.00390625
    %v28 = vlaneseq
    %v29 = vand.u32 %v28, 127
    %v30 = vlaneseq
    %v31 = vshrl.u32 %v30, 7
    %v32 = vsub.s32 %v29, %v31
    %v33 = vrot.slane %v26, %v32
    %vm35 = vcmask 57344
    %36 = vst.msk [vmem:[#allocation5] sm:$0x1] %vm35, %v33
    // Predicated region
    $region10: #{tpu_custom_call.1} parent=1 // pred_check
      _
    $region11: #{tpu_custom_call.1} parent=1 // pred_check_branch
      %38 = sbr.rel (0) target = $region13
    $region12: #{tpu_custom_call.1} parent=1 // pred_region
      %s40 = ssub.s32 16, 16
      %41 = vsyncadd [#allocation4], %s40
      %s43 = sshll.u32 [#allocation5], 4
      %s44 = int_to_ptr.vmem [resolvable:$true] %s43
      %46 = dma.vmem_to_hbm [thread:$0]  %s44, 16, %s1, [#allocation4]
    $region13: #{tpu_custom_call.1} parent=1 // pred_fallthru
      _
    // Predicated region
    $region14: #{tpu_custom_call.1} parent=1 // pred_check
      _
    $region15: #{tpu_custom_call.1} parent=1 // pred_check_branch
      %48 = sbr.rel (0) target = $region17
    $region16: #{tpu_custom_call.1} parent=1 // pred_region
      %49 = dma.done [#allocation4], 16
    $region17: #{tpu_custom_call.1} parent=1 // pred_fallthru
      _
    %50 = vsyncpa [#allocation3], 1
    %51 = vsyncpa [#allocation4], 1

</llo_original>
